<compile_context>
chip_gen: v5e
topology: v5e:2x2
jax: 0.10.0
libtpu: 0.0.40
codegen_flags: <defaults>
</compile_context>

<pallas_src>
import numpy as np
import jax
import jax.numpy as jnp
from jax.experimental import pallas as pl
from jax.experimental.pallas import tpu as pltpu


def _round_up(a, b):
    return (a + b - 1) // b * b


def _gather_rows_kernel(idx_ref, x_ref, o_ref):
    """o[r, :] = x[idx[n_tile*TILE_N + r], :] for the current (d, n) tile."""
    tile_n = o_ref.shape[0]
    base = pl.program_id(1) * tile_n          # first output row of this tile
    for r in range(tile_n):                   # static trip count -> unrolled
        src = idx_ref[base + r]               # scalar index read from SMEM
        o_ref[pl.ds(r, 1), :] = x_ref[pl.ds(src, 1), :]


def adaptive_speed_gather(x, idx, n_out):
    """Gather rows of x (T, D) at int32 indices `idx`; return (n_out, D)."""
    T, D = x.shape

    # Dtype-aware sublane multiple for the output row tile (perf review item).
    sub = {4: 8, 2: 16, 1: 32}[jnp.dtype(x.dtype).itemsize]
    tile_n = max(sub, min(8 * sub, _round_up(n_out, sub)))
    n_pad = _round_up(n_out, tile_n)
    nn = n_pad // tile_n

    # Lane-dense feature tile: multiple of 128 when D allows, else full D.
    if D % 128 == 0:
        tile_d = min(D, 512)
        while D % tile_d != 0:
            tile_d -= 128
    else:
        tile_d = D                            # full-extent block is always legal
    nd = D // tile_d

    # Pad indices to n_pad (extra rows are valid gathers, sliced off below).
    idx = np.asarray(idx, dtype=np.int32)
    idx_pad = np.zeros((n_pad,), dtype=np.int32)
    idx_pad[: idx.shape[0]] = idx
    if idx.shape[0] > 0 and n_pad > idx.shape[0]:
        idx_pad[idx.shape[0]:] = idx[-1]
    idx_pad = jnp.asarray(idx_pad)

    out_padded = pl.pallas_call(
        _gather_rows_kernel,
        out_shape=jax.ShapeDtypeStruct((n_pad, D), x.dtype),
        grid_spec=pltpu.PrefetchScalarGridSpec(
            num_scalar_prefetch=1,
            grid=(nd, nn),
            # index_maps receive (grid idxs..., *prefetch refs)
            in_specs=[pl.BlockSpec((T, tile_d), lambda d, n, idx_ref: (0, d))],
            out_specs=pl.BlockSpec((tile_n, tile_d),
                                   lambda d, n, idx_ref: (n, d)),
        ),
        compiler_params=pltpu.CompilerParams(
            dimension_semantics=("parallel", "arbitrary")),
    )(idx_pad, x)

    return out_padded[:n_out]


def adaptive_speed(x, key, max_times=1.1):
    """Reproduce AdaptiveSpeed.forward with deterministic JAX randomness."""
    T = x.shape[0]
    bound = int(round(max_times * T)) + 1
    # torch.randint(T, bound, (1,)).item(): one batched call, one host sync.
    needs = int(jax.random.randint(key, (), T, bound, dtype=jnp.int32))
    # torch.linspace(0, T-1, needs, dtype=int64): evenly spaced, truncated.
    if needs == 1:
        idx = np.zeros((1,), dtype=np.int32)
    else:
        idx = np.trunc(np.linspace(0.0, float(T - 1), needs)).astype(np.int32)
    # TODO(synk): output length is data-dependent (random); it is resolved
    # host-side so the pallas_call has a static shape, matching .item() usage.
    out = adaptive_speed_gather(x, idx, needs)
    return out, idx


if __name__ == "__main__":
    key = jax.random.PRNGKey(0)
    k_x, k_needs = jax.random.split(key)

    T, D = 16, 128          # small time-major input: seq=16, hidden=128
    max_times = 1.1

    x = jax.random.normal(k_x, (T, D), dtype=jnp.float32)

    out, idx = adaptive_speed(x, k_needs, max_times=max_times)
    out = jax.block_until_ready(out)

    # Pure-JAX reference for the gather hot path (exact copy semantics).
    ref = jnp.take(x, jnp.asarray(idx, dtype=jnp.int32), axis=0)
    assert out.shape == ref.shape, (out.shape, ref.shape)
    np.testing.assert_array_equal(np.asarray(out), np.asarray(ref))
    print("KERNEL_OK")
</pallas_src>

<mosaic_0001>
module attributes {stable_mosaic.version = 11 : i64} {
  func.func @_gather_rows_kernel(%arg0: i32, %arg1: i32, %arg2: memref<24xi32, #tpu.memory_space<smem>>, %arg3: memref<16x128xf32, #tpu.memory_space<vmem>>, %arg4: memref<24x128xf32, #tpu.memory_space<vmem>>) attributes {dimension_semantics = [#tpu.dimension_semantics<parallel>, #tpu.dimension_semantics<arbitrary>], iteration_bounds = array<i64: 1, 1>, scalar_prefetch = 1 : i64, scratch_operands = 0 : i64, tpu.core_type = #tpu.core_type<tc>, window_params = [{transform_indices = @transform_0, window_bounds = array<i64: 16, 128>}, {transform_indices = @transform_1, window_bounds = array<i64: 24, 128>}]} {
    %c24_i32 = arith.constant 24 : i32
    %0 = arith.muli %arg1, %c24_i32 : i32
    %c0_i32 = arith.constant 0 : i32
    %1 = arith.addi %0, %c0_i32 : i32
    %2 = arith.index_cast %1 : i32 to index
    %3 = memref.load %arg2[%2] : memref<24xi32, #tpu.memory_space<smem>>
    %4 = arith.index_cast %3 : i32 to index
    %c0 = arith.constant 0 : index
    %5 = vector.load %arg3[%4, %c0] : memref<16x128xf32, #tpu.memory_space<vmem>>, vector<1x128xf32>
    %c0_0 = arith.constant 0 : index
    %c0_1 = arith.constant 0 : index
    %6 = vector.load %arg4[%c0_0, %c0_1] : memref<24x128xf32, #tpu.memory_space<vmem>>, vector<1x128xf32>
    tpu.vector_store %arg4[%c0_0, %c0_1], %5 {strides = array<i32>} : memref<24x128xf32, #tpu.memory_space<vmem>>, vector<1x128xf32>,
    %c1_i32 = arith.constant 1 : i32
    %7 = arith.addi %0, %c1_i32 : i32
    %8 = arith.index_cast %7 : i32 to index
    %9 = memref.load %arg2[%8] : memref<24xi32, #tpu.memory_space<smem>>
    %10 = arith.index_cast %9 : i32 to index
    %c0_2 = arith.constant 0 : index
    %11 = vector.load %arg3[%10, %c0_2] : memref<16x128xf32, #tpu.memory_space<vmem>>, vector<1x128xf32>
    %c1 = arith.constant 1 : index
    %c0_3 = arith.constant 0 : index
    %12 = vector.load %arg4[%c1, %c0_3] : memref<24x128xf32, #tpu.memory_space<vmem>>, vector<1x128xf32>
    tpu.vector_store %arg4[%c1, %c0_3], %11 {strides = array<i32>} : memref<24x128xf32, #tpu.memory_space<vmem>>, vector<1x128xf32>,
    %c2_i32 = arith.constant 2 : i32
    %13 = arith.addi %0, %c2_i32 : i32
    %14 = arith.index_cast %13 : i32 to index
    %15 = memref.load %arg2[%14] : memref<24xi32, #tpu.memory_space<smem>>
    %16 = arith.index_cast %15 : i32 to index
    %c0_4 = arith.constant 0 : index
    %17 = vector.load %arg3[%16, %c0_4] : memref<16x128xf32, #tpu.memory_space<vmem>>, vector<1x128xf32>
    %c2 = arith.constant 2 : index
    %c0_5 = arith.constant 0 : index
    %18 = vector.load %arg4[%c2, %c0_5] : memref<24x128xf32, #tpu.memory_space<vmem>>, vector<1x128xf32>
    tpu.vector_store %arg4[%c2, %c0_5], %17 {strides = array<i32>} : memref<24x128xf32, #tpu.memory_space<vmem>>, vector<1x128xf32>,
    %c3_i32 = arith.constant 3 : i32
    %19 = arith.addi %0, %c3_i32 : i32
    %20 = arith.index_cast %19 : i32 to index
    %21 = memref.load %arg2[%20] : memref<24xi32, #tpu.memory_space<smem>>
    %22 = arith.index_cast %21 : i32 to index
    %c0_6 = arith.constant 0 : index
    %23 = vector.load %arg3[%22, %c0_6] : memref<16x128xf32, #tpu.memory_space<vmem>>, vector<1x128xf32>
    %c3 = arith.constant 3 : index
    %c0_7 = arith.constant 0 : index
    %24 = vector.load %arg4[%c3, %c0_7] : memref<24x128xf32, #tpu.memory_space<vmem>>, vector<1x128xf32>
    tpu.vector_store %arg4[%c3, %c0_7], %23 {strides = array<i32>} : memref<24x128xf32, #tpu.memory_space<vmem>>, vector<1x128xf32>,
    %c4_i32 = arith.constant 4 : i32
    %25 = arith.addi %0, %c4_i32 : i32
    %26 = arith.index_cast %25 : i32 to index
    %27 = memref.load %arg2[%26] : memref<24xi32, #tpu.memory_space<smem>>
    %28 = arith.index_cast %27 : i32 to index
    %c0_8 = arith.constant 0 : index
    %29 = vector.load %arg3[%28, %c0_8] : memref<16x128xf32, #tpu.memory_space<vmem>>, vector<1x128xf32>
    %c4 = arith.constant 4 : index
    %c0_9 = arith.constant 0 : index
    %30 = vector.load %arg4[%c4, %c0_9] : memref<24x128xf32, #tpu.memory_space<vmem>>, vector<1x128xf32>
    tpu.vector_store %arg4[%c4, %c0_9], %29 {strides = array<i32>} : memref<24x128xf32, #tpu.memory_space<vmem>>, vector<1x128xf32>,
    %c5_i32 = arith.constant 5 : i32
    %31 = arith.addi %0, %c5_i32 : i32
    %32 = arith.index_cast %31 : i32 to index
    %33 = memref.load %arg2[%32] : memref<24xi32, #tpu.memory_space<smem>>
    %34 = arith.index_cast %33 : i32 to index
    %c0_10 = arith.constant 0 : index
    %35 = vector.load %arg3[%34, %c0_10] : memref<16x128xf32, #tpu.memory_space<vmem>>, vector<1x128xf32>
    %c5 = arith.constant 5 : index
    %c0_11 = arith.constant 0 : index
    %36 = vector.load %arg4[%c5, %c0_11] : memref<24x128xf32, #tpu.memory_space<vmem>>, vector<1x128xf32>
    tpu.vector_store %arg4[%c5, %c0_11], %35 {strides = array<i32>} : memref<24x128xf32, #tpu.memory_space<vmem>>, vector<1x128xf32>,
    %c6_i32 = arith.constant 6 : i32
    %37 = arith.addi %0, %c6_i32 : i32
    %38 = arith.index_cast %37 : i32 to index
    %39 = memref.load %arg2[%38] : memref<24xi32, #tpu.memory_space<smem>>
    %40 = arith.index_cast %39 : i32 to index
    %c0_12 = arith.constant 0 : index
    %41 = vector.load %arg3[%40, %c0_12] : memref<16x128xf32, #tpu.memory_space<vmem>>, vector<1x128xf32>
    %c6 = arith.constant 6 : index
    %c0_13 = arith.constant 0 : index
    %42 = vector.load %arg4[%c6, %c0_13] : memref<24x128xf32, #tpu.memory_space<vmem>>, vector<1x128xf32>
    tpu.vector_store %arg4[%c6, %c0_13], %41 {strides = array<i32>} : memref<24x128xf32, #tpu.memory_space<vmem>>, vector<1x128xf32>,
    %c7_i32 = arith.constant 7 : i32
    %43 = arith.addi %0, %c7_i32 : i32
    %44 = arith.index_cast %43 : i32 to index
    %45 = memref.load %arg2[%44] : memref<24xi32, #tpu.memory_space<smem>>
    %46 = arith.index_cast %45 : i32 to index
    %c0_14 = arith.constant 0 : index
    %47 = vector.load %arg3[%46, %c0_14] : memref<16x128xf32, #tpu.memory_space<vmem>>, vector<1x128xf32>
    %c7 = arith.constant 7 : index
    %c0_15 = arith.constant 0 : index
    %48 = vector.load %arg4[%c7, %c0_15] : memref<24x128xf32, #tpu.memory_space<vmem>>, vector<1x128xf32>
    tpu.vector_store %arg4[%c7, %c0_15], %47 {strides = array<i32>} : memref<24x128xf32, #tpu.memory_space<vmem>>, vector<1x128xf32>,
    %c8_i32 = arith.constant 8 : i32
    %49 = arith.addi %0, %c8_i32 : i32
    %50 = arith.index_cast %49 : i32 to index
    %51 = memref.load %arg2[%50] : memref<24xi32, #tpu.memory_space<smem>>
    %52 = arith.index_cast %51 : i32 to index
    %c0_16 = arith.constant 0 : index
    %53 = vector.load %arg3[%52, %c0_16] : memref<16x128xf32, #tpu.memory_space<vmem>>, vector<1x128xf32>
    %c8 = arith.constant 8 : index
    %c0_17 = arith.constant 0 : index
    %54 = vector.load %arg4[%c8, %c0_17] : memref<24x128xf32, #tpu.memory_space<vmem>>, vector<1x128xf32>
    tpu.vector_store %arg4[%c8, %c0_17], %53 {strides = array<i32>} : memref<24x128xf32, #tpu.memory_space<vmem>>, vector<1x128xf32>,
    %c9_i32 = arith.constant 9 : i32
    %55 = arith.addi %0, %c9_i32 : i32
    %56 = arith.index_cast %55 : i32 to index
    %57 = memref.load %arg2[%56] : memref<24xi32, #tpu.memory_space<smem>>
    %58 = arith.index_cast %57 : i32 to index
    %c0_18 = arith.constant 0 : index
    %59 = vector.load %arg3[%58, %c0_18] : memref<16x128xf32, #tpu.memory_space<vmem>>, vector<1x128xf32>
    %c9 = arith.constant 9 : index
    %c0_19 = arith.constant 0 : index
    %60 = vector.load %arg4[%c9, %c0_19] : memref<24x128xf32, #tpu.memory_space<vmem>>, vector<1x128xf32>
    tpu.vector_store %arg4[%c9, %c0_19], %59 {strides = array<i32>} : memref<24x128xf32, #tpu.memory_space<vmem>>, vector<1x128xf32>,
    %c10_i32 = arith.constant 10 : i32
    %61 = arith.addi %0, %c10_i32 : i32
    %62 = arith.index_cast %61 : i32 to index
    %63 = memref.load %arg2[%62] : memref<24xi32, #tpu.memory_space<smem>>
    %64 = arith.index_cast %63 : i32 to index
    %c0_20 = arith.constant 0 : index
    %65 = vector.load %arg3[%64, %c0_20] : memref<16x128xf32, #tpu.memory_space<vmem>>, vector<1x128xf32>
    %c10 = arith.constant 10 : index
    %c0_21 = arith.constant 0 : index
    %66 = vector.load %arg4[%c10, %c0_21] : memref<24x128xf32, #tpu.memory_space<vmem>>, vector<1x128xf32>
    tpu.vector_store %arg4[%c10, %c0_21], %65 {strides = array<i32>} : memref<24x128xf32, #tpu.memory_space<vmem>>, vector<1x128xf32>,
    %c11_i32 = arith.constant 11 : i32
    %67 = arith.addi %0, %c11_i32 : i32
    %68 = arith.index_cast %67 : i32 to index
    %69 = memref.load %arg2[%68] : memref<24xi32, #tpu.memory_space<smem>>
    %70 = arith.index_cast %69 : i32 to index
    %c0_22 = arith.constant 0 : index
    %71 = vector.load %arg3[%70, %c0_22] : memref<16x128xf32, #tpu.memory_space<vmem>>, vector<1x128xf32>
    %c11 = arith.constant 11 : index
    %c0_23 = arith.constant 0 : index
    %72 = vector.load %arg4[%c11, %c0_23] : memref<24x128xf32, #tpu.memory_space<vmem>>, vector<1x128xf32>
    tpu.vector_store %arg4[%c11, %c0_23], %71 {strides = array<i32>} : memref<24x128xf32, #tpu.memory_space<vmem>>, vector<1x128xf32>,
    %c12_i32 = arith.constant 12 : i32
    %73 = arith.addi %0, %c12_i32 : i32
    %74 = arith.index_cast %73 : i32 to index
    %75 = memref.load %arg2[%74] : memref<24xi32, #tpu.memory_space<smem>>
    %76 = arith.index_cast %75 : i32 to index
    %c0_24 = arith.constant 0 : index
    %77 = vector.load %arg3[%76, %c0_24] : memref<16x128xf32, #tpu.memory_space<vmem>>, vector<1x128xf32>
    %c12 = arith.constant 12 : index
    %c0_25 = arith.constant 0 : index
    %78 = vector.load %arg4[%c12, %c0_25] : memref<24x128xf32, #tpu.memory_space<vmem>>, vector<1x128xf32>
    tpu.vector_store %arg4[%c12, %c0_25], %77 {strides = array<i32>} : memref<24x128xf32, #tpu.memory_space<vmem>>, vector<1x128xf32>,
    %c13_i32 = arith.constant 13 : i32
    %79 = arith.addi %0, %c13_i32 : i32
    %80 = arith.index_cast %79 : i32 to index
    %81 = memref.load %arg2[%80] : memref<24xi32, #tpu.memory_space<smem>>
    %82 = arith.index_cast %81 : i32 to index
    %c0_26 = arith.constant 0 : index
    %83 = vector.load %arg3[%82, %c0_26] : memref<16x128xf32, #tpu.memory_space<vmem>>, vector<1x128xf32>
    %c13 = arith.constant 13 : index
    %c0_27 = arith.constant 0 : index
    %84 = vector.load %arg4[%c13, %c0_27] : memref<24x128xf32, #tpu.memory_space<vmem>>, vector<1x128xf32>
    tpu.vector_store %arg4[%c13, %c0_27], %83 {strides = array<i32>} : memref<24x128xf32, #tpu.memory_space<vmem>>, vector<1x128xf32>,
    %c14_i32 = arith.constant 14 : i32
    %85 = arith.addi %0, %c14_i32 : i32
    %86 = arith.index_cast %85 : i32 to index
    %87 = memref.load %arg2[%86] : memref<24xi32, #tpu.memory_space<smem>>
    %88 = arith.index_cast %87 : i32 to index
    %c0_28 = arith.constant 0 : index
    %89 = vector.load %arg3[%88, %c0_28] : memref<16x128xf32, #tpu.memory_space<vmem>>, vector<1x128xf32>
    %c14 = arith.constant 14 : index
    %c0_29 = arith.constant 0 : index
    %90 = vector.load %arg4[%c14, %c0_29] : memref<24x128xf32, #tpu.memory_space<vmem>>, vector<1x128xf32>
    tpu.vector_store %arg4[%c14, %c0_29], %89 {strides = array<i32>} : memref<24x128xf32, #tpu.memory_space<vmem>>, vector<1x128xf32>,
    %c15_i32 = arith.constant 15 : i32
    %91 = arith.addi %0, %c15_i32 : i32
    %92 = arith.index_cast %91 : i32 to index
    %93 = memref.load %arg2[%92] : memref<24xi32, #tpu.memory_space<smem>>
    %94 = arith.index_cast %93 : i32 to index
    %c0_30 = arith.constant 0 : index
    %95 = vector.load %arg3[%94, %c0_30] : memref<16x128xf32, #tpu.memory_space<vmem>>, vector<1x128xf32>
    %c15 = arith.constant 15 : index
    %c0_31 = arith.constant 0 : index
    %96 = vector.load %arg4[%c15, %c0_31] : memref<24x128xf32, #tpu.memory_space<vmem>>, vector<1x128xf32>
    tpu.vector_store %arg4[%c15, %c0_31], %95 {strides = array<i32>} : memref<24x128xf32, #tpu.memory_space<vmem>>, vector<1x128xf32>,
    %c16_i32 = arith.constant 16 : i32
    %97 = arith.addi %0, %c16_i32 : i32
    %98 = arith.index_cast %97 : i32 to index
    %99 = memref.load %arg2[%98] : memref<24xi32, #tpu.memory_space<smem>>
    %100 = arith.index_cast %99 : i32 to index
    %c0_32 = arith.constant 0 : index
    %101 = vector.load %arg3[%100, %c0_32] : memref<16x128xf32, #tpu.memory_space<vmem>>, vector<1x128xf32>
    %c16 = arith.constant 16 : index
    %c0_33 = arith.constant 0 : index
    %102 = vector.load %arg4[%c16, %c0_33] : memref<24x128xf32, #tpu.memory_space<vmem>>, vector<1x128xf32>
    tpu.vector_store %arg4[%c16, %c0_33], %101 {strides = array<i32>} : memref<24x128xf32, #tpu.memory_space<vmem>>, vector<1x128xf32>,
    %c17_i32 = arith.constant 17 : i32
    %103 = arith.addi %0, %c17_i32 : i32
    %104 = arith.index_cast %103 : i32 to index
    %105 = memref.load %arg2[%104] : memref<24xi32, #tpu.memory_space<smem>>
    %106 = arith.index_cast %105 : i32 to index
    %c0_34 = arith.constant 0 : index
    %107 = vector.load %arg3[%106, %c0_34] : memref<16x128xf32, #tpu.memory_space<vmem>>, vector<1x128xf32>
    %c17 = arith.constant 17 : index
    %c0_35 = arith.constant 0 : index
    %108 = vector.load %arg4[%c17, %c0_35] : memref<24x128xf32, #tpu.memory_space<vmem>>, vector<1x128xf32>
    tpu.vector_store %arg4[%c17, %c0_35], %107 {strides = array<i32>} : memref<24x128xf32, #tpu.memory_space<vmem>>, vector<1x128xf32>,
    %c18_i32 = arith.constant 18 : i32
    %109 = arith.addi %0, %c18_i32 : i32
    %110 = arith.index_cast %109 : i32 to index
    %111 = memref.load %arg2[%110] : memref<24xi32, #tpu.memory_space<smem>>
    %112 = arith.index_cast %111 : i32 to index
    %c0_36 = arith.constant 0 : index
    %113 = vector.load %arg3[%112, %c0_36] : memref<16x128xf32, #tpu.memory_space<vmem>>, vector<1x128xf32>
    %c18 = arith.constant 18 : index
    %c0_37 = arith.constant 0 : index
    %114 = vector.load %arg4[%c18, %c0_37] : memref<24x128xf32, #tpu.memory_space<vmem>>, vector<1x128xf32>
    tpu.vector_store %arg4[%c18, %c0_37], %113 {strides = array<i32>} : memref<24x128xf32, #tpu.memory_space<vmem>>, vector<1x128xf32>,
    %c19_i32 = arith.constant 19 : i32
    %115 = arith.addi %0, %c19_i32 : i32
    %116 = arith.index_cast %115 : i32 to index
    %117 = memref.load %arg2[%116] : memref<24xi32, #tpu.memory_space<smem>>
    %118 = arith.index_cast %117 : i32 to index
    %c0_38 = arith.constant 0 : index
    %119 = vector.load %arg3[%118, %c0_38] : memref<16x128xf32, #tpu.memory_space<vmem>>, vector<1x128xf32>
    %c19 = arith.constant 19 : index
    %c0_39 = arith.constant 0 : index
    %120 = vector.load %arg4[%c19, %c0_39] : memref<24x128xf32, #tpu.memory_space<vmem>>, vector<1x128xf32>
    tpu.vector_store %arg4[%c19, %c0_39], %119 {strides = array<i32>} : memref<24x128xf32, #tpu.memory_space<vmem>>, vector<1x128xf32>,
    %c20_i32 = arith.constant 20 : i32
    %121 = arith.addi %0, %c20_i32 : i32
    %122 = arith.index_cast %121 : i32 to index
    %123 = memref.load %arg2[%122] : memref<24xi32, #tpu.memory_space<smem>>
    %124 = arith.index_cast %123 : i32 to index
    %c0_40 = arith.constant 0 : index
    %125 = vector.load %arg3[%124, %c0_40] : memref<16x128xf32, #tpu.memory_space<vmem>>, vector<1x128xf32>
    %c20 = arith.constant 20 : index
    %c0_41 = arith.constant 0 : index
    %126 = vector.load %arg4[%c20, %c0_41] : memref<24x128xf32, #tpu.memory_space<vmem>>, vector<1x128xf32>
    tpu.vector_store %arg4[%c20, %c0_41], %125 {strides = array<i32>} : memref<24x128xf32, #tpu.memory_space<vmem>>, vector<1x128xf32>,
    %c21_i32 = arith.constant 21 : i32
    %127 = arith.addi %0, %c21_i32 : i32
    %128 = arith.index_cast %127 : i32 to index
    %129 = memref.load %arg2[%128] : memref<24xi32, #tpu.memory_space<smem>>
    %130 = arith.index_cast %129 : i32 to index
    %c0_42 = arith.constant 0 : index
    %131 = vector.load %arg3[%130, %c0_42] : memref<16x128xf32, #tpu.memory_space<vmem>>, vector<1x128xf32>
    %c21 = arith.constant 21 : index
    %c0_43 = arith.constant 0 : index
    %132 = vector.load %arg4[%c21, %c0_43] : memref<24x128xf32, #tpu.memory_space<vmem>>, vector<1x128xf32>
    tpu.vector_store %arg4[%c21, %c0_43], %131 {strides = array<i32>} : memref<24x128xf32, #tpu.memory_space<vmem>>, vector<1x128xf32>,
    %c22_i32 = arith.constant 22 : i32
    %133 = arith.addi %0, %c22_i32 : i32
    %134 = arith.index_cast %133 : i32 to index
    %135 = memref.load %arg2[%134] : memref<24xi32, #tpu.memory_space<smem>>
    %136 = arith.index_cast %135 : i32 to index
    %c0_44 = arith.constant 0 : index
    %137 = vector.load %arg3[%136, %c0_44] : memref<16x128xf32, #tpu.memory_space<vmem>>, vector<1x128xf32>
    %c22 = arith.constant 22 : index
    %c0_45 = arith.constant 0 : index
    %138 = vector.load %arg4[%c22, %c0_45] : memref<24x128xf32, #tpu.memory_space<vmem>>, vector<1x128xf32>
    tpu.vector_store %arg4[%c22, %c0_45], %137 {strides = array<i32>} : memref<24x128xf32, #tpu.memory_space<vmem>>, vector<1x128xf32>,
    %c23_i32 = arith.constant 23 : i32
    %139 = arith.addi %0, %c23_i32 : i32
    %140 = arith.index_cast %139 : i32 to index
    %141 = memref.load %arg2[%140] : memref<24xi32, #tpu.memory_space<smem>>
    %142 = arith.index_cast %141 : i32 to index
    %c0_46 = arith.constant 0 : index
    %143 = vector.load %arg3[%142, %c0_46] : memref<16x128xf32, #tpu.memory_space<vmem>>, vector<1x128xf32>
    %c23 = arith.constant 23 : index
    %c0_47 = arith.constant 0 : index
    %144 = vector.load %arg4[%c23, %c0_47] : memref<24x128xf32, #tpu.memory_space<vmem>>, vector<1x128xf32>
    tpu.vector_store %arg4[%c23, %c0_47], %143 {strides = array<i32>} : memref<24x128xf32, #tpu.memory_space<vmem>>, vector<1x128xf32>,
    return
  }
  func.func @transform_0(%arg0: i32, %arg1: i32, %arg2: memref<24xi32, #tpu.memory_space<smem>>) -> (i32, i32) {
    %c0_i32 = arith.constant 0 : i32
    %c0_i32_0 = arith.constant 0 : i32
    return %c0_i32, %arg0 : i32, i32
  }
  func.func @transform_1(%arg0: i32, %arg1: i32, %arg2: memref<24xi32, #tpu.memory_space<smem>>) -> (i32, i32) {
    %c0_i32 = arith.constant 0 : i32
    return %arg1, %arg0 : i32, i32
  }
}

</mosaic_0001>

<llo_original>
// kernel: tpu_custom_call.1
$region0: #{tpu_custom_call.1}
  #allocation0 [shape = 'u32[]', space=smem, size = 0x4, offset = 0x4, fixed_abs, tag = 'smem constant byte address 0x4 - core index']
  #allocation1 [shape = 'u32[72,128]{1,0:T(1,128)}', space=vmem, size = 0x9000, scoped, tag = 'internal scratch']
  #allocation2 [shape = 's32[1]{0}', space=sflag, size = 0x4, scoped, tag = 'scoped memory for tpu_custom_call.1']
  #allocation3 [shape = 'u8[512]{0}', space=smem, size = 0x200, scoped, tag = 'prefetched SMEM operand 0']
  %s0 = inlined_call_operand.hbm [shape: s32[24], index: 0, kind: input, shape index: {}]
  %s1 = inlined_call_operand.hbm [shape: f32[16,128], index: 1, kind: input, shape index: {}]
  %s2 = inlined_call_operand.hbm [shape: f32[24,128], index: 2, kind: output, shape index: {}]
  %s3 = sld [smem:[#allocation0]]
  $region18: #{tpu_custom_call.1} parent=0
    _
  %s5 = ssub.s32 1, %s3
  %s6 = scalar_select 0, %s5, %s3
  %s8 = sshll.u32 %s0, 4
  %s9 = int_to_ptr.hbm [resolvable:$true] %s8
  %11 = dma.hbm_to_smem %s9, 16, [#allocation3], [#allocation2]
  %13 = dma.done [#allocation2], 16
  %14 = sfence
  $region1: #{tpu_custom_call.1} parent=0
    #allocation4 [shape = 'u8[8192]{0}', space=vmem, size = 0x2000, scoped, tag = 'input window, operand 1, single buffered']
    #allocation5 [shape = 's32[1]{0}', space=sflag, size = 0x4, scoped, tag = 'scoped memory for tpu_custom_call.1']
    #allocation6 [shape = 's32[1]{0}', space=sflag, size = 0x4, scoped, tag = 'scoped memory for tpu_custom_call.1']
    #allocation7 [shape = 'u8[12288]{0}', space=vmem, size = 0x3000, scoped, tag = 'output window, operand 0, single buffered']
    %15 = vsyncpa [#allocation5], 0
    %16 = vsyncpa [#allocation6], 0
    // Predicated region
    $region2: #{tpu_custom_call.1} parent=1 // pred_check
      _
    $region3: #{tpu_custom_call.1} parent=1 // pred_check_branch
      %18 = sbr.rel (0) target = $region5
    $region4: #{tpu_custom_call.1} parent=1 // pred_region
      %20 = vsyncadd [#allocation5], 0
      %s21 = sshll.u32 %s1, 4
      %s22 = int_to_ptr.hbm [resolvable:$true] %s21
      %s23 = sshll.u32 [#allocation4], 4
      %s24 = int_to_ptr.vmem [resolvable:$true] %s23
      %29 = dma.hbm_to_vmem [thread:$0]  %s22, 256, %s24, [#allocation5], 128, 128, 8
    $region5: #{tpu_custom_call.1} parent=1 // pred_fallthru
      _
    // Predicated region
    $region6: #{tpu_custom_call.1} parent=1 // pred_check
      _
    $region7: #{tpu_custom_call.1} parent=1 // pred_check_branch
      %31 = sbr.rel (0) target = $region9
    $region8: #{tpu_custom_call.1} parent=1 // pred_region
      %33 = dma.done [#allocation5], 256
    $region9: #{tpu_custom_call.1} parent=1 // pred_fallthru
      _
    %s34 = smul.u32 0, 24
    %s35 = sld [smem:[#allocation3 + %s34]]
    %s36 = scalar_lea.vmem [#allocation4], %s35
    %v37 = vld [vmem:[%s36] sm:$0x1]
    %38 = vst [vmem:[#allocation7] sm:$0x1] %v37
    %s39 = sadd.s32 %s34, 1
    %s40 = sld [smem:[#allocation3 + %s39]]
    %s41 = scalar_lea.vmem [#allocation4], %s40
    %v42 = vld [vmem:[%s41] sm:$0x1]
    %43 = vst [vmem:[#allocation7 + $0x1] sm:$0x1] %v42
    %s44 = sadd.s32 %s34, 2
    %s45 = sld [smem:[#allocation3 + %s44]]
    %s46 = scalar_lea.vmem [#allocation4], %s45
    %v47 = vld [vmem:[%s46] sm:$0x1]
    %48 = vst [vmem:[#allocation7 + $0x2] sm:$0x1] %v47
    %s49 = sadd.s32 %s34, 3
    %s50 = sld [smem:[#allocation3 + %s49]]
    %s51 = scalar_lea.vmem [#allocation4], %s50
    %v52 = vld [vmem:[%s51] sm:$0x1]
    %53 = vst [vmem:[#allocation7 + $0x3] sm:$0x1] %v52
    %s54 = sadd.s32 %s34, 4
    %s55 = sld [smem:[#allocation3 + %s54]]
    %s56 = scalar_lea.vmem [#allocation4], %s55
    %v57 = vld [vmem:[%s56] sm:$0x1]
    %58 = vst [vmem:[#allocation7 + $0x4] sm:$0x1] %v57
    %s59 = sadd.s32 %s34, 5
    %s60 = sld [smem:[#allocation3 + %s59]]
    %s61 = scalar_lea.vmem [#allocation4], %s60
    %v62 = vld [vmem:[%s61] sm:$0x1]
    %63 = vst [vmem:[#allocation7 + $0x5] sm:$0x1] %v62
    %s64 = sadd.s32 %s34, 6
    %s65 = sld [smem:[#allocation3 + %s64]]
    %s66 = scalar_lea.vmem [#allocation4], %s65
    %v67 = vld [vmem:[%s66] sm:$0x1]
    %68 = vst [vmem:[#allocation7 + $0x6] sm:$0x1] %v67
    %s69 = sadd.s32 %s34, 7
    %s70 = sld [smem:[#allocation3 + %s69]]
    %s71 = scalar_lea.vmem [#allocation4], %s70
    %v72 = vld [vmem:[%s71] sm:$0x1]
    %73 = vst [vmem:[#allocation7 + $0x7] sm:$0x1] %v72
    %s74 = sadd.s32 %s34, 8
    %s75 = sld [smem:[#allocation3 + %s74]]
    %s76 = scalar_lea.vmem [#allocation4], %s75
    %v77 = vld [vmem:[%s76] sm:$0x1]
    %78 = vst [vmem:[#allocation7 + $0x8] sm:$0x1] %v77
    %s79 = sadd.s32 %s34, 9
    %s80 = sld [smem:[#allocation3 + %s79]]
    %s81 = scalar_lea.vmem [#allocation4], %s80
    %v82 = vld [vmem:[%s81] sm:$0x1]
    %83 = vst [vmem:[#allocation7 + $0x9] sm:$0x1] %v82
    %s84 = sadd.s32 %s34, 10
    %s85 = sld [smem:[#allocation3 + %s84]]
    %s86 = scalar_lea.vmem [#allocation4], %s85
    %v87 = vld [vmem:[%s86] sm:$0x1]
    %88 = vst [vmem:[#allocation7 + $0xa] sm:$0x1] %v87
    %s89 = sadd.s32 %s34, 11
    %s90 = sld [smem:[#allocation3 + %s89]]
    %s91 = scalar_lea.vmem [#allocation4], %s90
    %v92 = vld [vmem:[%s91] sm:$0x1]
    %93 = vst [vmem:[#allocation7 + $0xb] sm:$0x1] %v92
    %s94 = sadd.s32 %s34, 12
    %s95 = sld [smem:[#allocation3 + %s94]]
    %s96 = scalar_lea.vmem [#allocation4], %s95
    %v97 = vld [vmem:[%s96] sm:$0x1]
    %98 = vst [vmem:[#allocation7 + $0xc] sm:$0x1] %v97
    %s99 = sadd.s32 %s34, 13
    %s100 = sld [smem:[#allocation3 + %s99]]
    %s101 = scalar_lea.vmem [#allocation4], %s100
    %v102 = vld [vmem:[%s101] sm:$0x1]
    %103 = vst [vmem:[#allocation7 + $0xd] sm:$0x1] %v102
    %s104 = sadd.s32 %s34, 14
    %s105 = sld [smem:[#allocation3 + %s104]]
    %s106 = scalar_lea.vmem [#allocation4], %s105
    %v107 = vld [vmem:[%s106] sm:$0x1]
    %108 = vst [vmem:[#allocation7 + $0xe] sm:$0x1] %v107
    %s109 = sadd.s32 %s34, 15
    %s110 = sld [smem:[#allocation3 + %s109]]
    %s111 = scalar_lea.vmem [#allocation4], %s110
    %v112 = vld [vmem:[%s111] sm:$0x1]
    %113 = vst [vmem:[#allocation7 + $0xf] sm:$0x1] %v112
    %s114 = sadd.s32 %s34, 16
    %s115 = sld [smem:[#allocation3 + %s114]]
    %s116 = scalar_lea.vmem [#allocation4], %s115
    %v117 = vld [vmem:[%s116] sm:$0x1]
    %118 = vst [vmem:[#allocation7 + $0x10] sm:$0x1] %v117
    %s119 = sadd.s32 %s34, 17
    %s120 = sld [smem:[#allocation3 + %s119]]
    %s121 = scalar_lea.vmem [#allocation4], %s120
    %v122 = vld [vmem:[%s121] sm:$0x1]
    %123 = vst [vmem:[#allocation7 + $0x11] sm:$0x1] %v122
    %s124 = sadd.s32 %s34, 18
    %s125 = sld [smem:[#allocation3 + %s124]]
    %s126 = scalar_lea.vmem [#allocation4], %s125
    %v127 = vld [vmem:[%s126] sm:$0x1]
    %128 = vst [vmem:[#allocation7 + $0x12] sm:$0x1] %v127
    %s129 = sadd.s32 %s34, 19
    %s130 = sld [smem:[#allocation3 + %s129]]
    %s131 = scalar_lea.vmem [#allocation4], %s130
    %v132 = vld [vmem:[%s131] sm:$0x1]
    %133 = vst [vmem:[#allocation7 + $0x13] sm:$0x1] %v132
    %s134 = sadd.s32 %s34, 20
    %s135 = sld [smem:[#allocation3 + %s134]]
    %s136 = scalar_lea.vmem [#allocation4], %s135
    %v137 = vld [vmem:[%s136] sm:$0x1]
    %138 = vst [vmem:[#allocation7 + $0x14] sm:$0x1] %v137
    %s139 = sadd.s32 %s34, 21
    %s140 = sld [smem:[#allocation3 + %s139]]
    %s141 = scalar_lea.vmem [#allocation4], %s140
    %v142 = vld [vmem:[%s141] sm:$0x1]
    %143 = vst [vmem:[#allocation7 + $0x15] sm:$0x1] %v142
    %s144 = sadd.s32 %s34, 22
    %s145 = sld [smem:[#allocation3 + %s144]]
    %s146 = scalar_lea.vmem [#allocation4], %s145
    %v147 = vld [vmem:[%s146] sm:$0x1]
    %148 = vst [vmem:[#allocation7 + $0x16] sm:$0x1] %v147
    %s149 = sadd.s32 %s34, 23
    %s150 = sld [smem:[#allocation3 + %s149]]
    %s151 = scalar_lea.vmem [#allocation4], %s150
    %v152 = vld [vmem:[%s151] sm:$0x1]
    %153 = vst [vmem:[#allocation7 + $0x17] sm:$0x1] %v152
    // Predicated region
    $region10: #{tpu_custom_call.1} parent=1 // pred_check
      _
    $region11: #{tpu_custom_call.1} parent=1 // pred_check_branch
      %155 = sbr.rel (0) target = $region13
    $region12: #{tpu_custom_call.1} parent=1 // pred_region
      %157 = vsyncadd [#allocation6], 0
      %s158 = sshll.u32 [#allocation7], 4
      %s159 = int_to_ptr.vmem [resolvable:$true] %s158
      %s160 = sshll.u32 %s2, 4
      %s161 = int_to_ptr.hbm [resolvable:$true] %s160
      %166 = dma.vmem_to_hbm [thread:$0]  %s159, 384, %s161, [#allocation6], 128, 128, 8
    $region13: #{tpu_custom_call.1} parent=1 // pred_fallthru
      _
    // Predicated region
    $region14: #{tpu_custom_call.1} parent=1 // pred_check
      _
    $region15: #{tpu_custom_call.1} parent=1 // pred_check_branch
      %168 = sbr.rel (0) target = $region17
    $region16: #{tpu_custom_call.1} parent=1 // pred_region
      %170 = dma.done [#allocation6], 384
    $region17: #{tpu_custom_call.1} parent=1 // pred_fallthru
      _
    %171 = vsyncpa [#allocation5], 1
    %172 = vsyncpa [#allocation6], 1

</llo_original>
